<compile_context>
chip_gen: v6e
topology: v6e:2x2x1
jax: 0.10.0
libtpu: 0.0.40
codegen_flags: <defaults>
</compile_context>

<pallas_src>
import functools

import jax
import jax.numpy as jnp
from jax.experimental import pallas as pl
from jax.experimental.pallas import tpu as pltpu


def _round_up(x: int, m: int) -> int:
    return (x + m - 1) // m * m


# ----------------------------- kernels --------------------------------------


def _gather_vmem_kernel(ids_ref, emb_ref, out_ref, *, tok_block):
    """Fast path: whole embedding table resident in VMEM.

    ids_ref : SMEM (n_tok_pad,) int32  (scalar prefetch)
    emb_ref : VMEM (V, D)              (same block every step -> stays resident)
    out_ref : VMEM (tok_block, D)      (dense output slab for this token block)
    """
    base = pl.program_id(0) * tok_block

    @pl.loop(0, tok_block)
    def _(t):
        row = ids_ref[base + t]
        out_ref[pl.ds(t, 1), :] = emb_ref[pl.ds(row, 1), :]


def _gather_hbm_kernel(ids_ref, emb_hbm, out_ref, buf, sem, *, tok_block):
    """Large-table path: batched row-gather DMAs from HBM.

    ids_ref : SMEM (n_tok_pad,) int32    (scalar prefetch)
    emb_hbm : HBM  (V, D)                (memory_space=pl.ANY, no auto-DMA)
    out_ref : VMEM (tok_block, D)
    buf     : VMEM (tok_block, D) staging scratch
    sem     : DMA semaphore (shared by all row copies of this block)
    """
    base = pl.program_id(0) * tok_block

    # Issue every row gather for this token block; all DMAs stay in flight
    # concurrently, hiding HBM latency inside the step.
    @pl.loop(0, tok_block)
    def _(t):
        row = ids_ref[base + t]
        pltpu.make_async_copy(
            emb_hbm.at[pl.ds(row, 1), :], buf.at[pl.ds(t, 1), :], sem.at[0]
        ).start()

    # Wait for all gathers (each wait retires one row's worth of bytes on sem).
    @pl.loop(0, tok_block)
    def _(t):
        pltpu.make_async_copy(
            emb_hbm.at[pl.ds(0, 1), :], buf.at[pl.ds(t, 1), :], sem.at[0]
        ).wait()

    # Lane/sublane-dense (tok_block, D) output -> unmasked vst + one big
    # contiguous writeback DMA (handled by Pallas' output pipeline).
    out_ref[...] = buf[...]


# ----------------------------- wrapper ---------------------------------------


def word_embedding_forward(
    input_ids: jax.Array,
    emb_weights: jax.Array,
    *,
    force_hbm_gather: bool = False,
) -> jax.Array:
    """Pallas embedding lookup.

    input_ids:   (B, S) integer ids
    emb_weights: (V, D) table (any float dtype; bf16 halves gather/writeback traffic)
    returns:     (B, S, D) with emb_weights.dtype
    """
    B, S = input_ids.shape
    V, D = emb_weights.shape
    dtype = emb_weights.dtype
    itemsize = jnp.dtype(dtype).itemsize
    n_tok = B * S

    # --- token-block sizing: amortize ~0.35us/step overhead, stay VMEM-safe ---
    # HBM path VMEM usage ~= staging buf + 2x output block = 3 * tok_block * D * itemsize.
    vmem_budget = 12 << 20
    tok_block = int(min(256, max(16, vmem_budget // (3 * D * itemsize))))
    tok_block = max(16, (tok_block // 16) * 16)       # sublane-dense for f32 and bf16
    tok_block = min(tok_block, _round_up(n_tok, 16))  # don't over-pad tiny inputs

    n_tok_pad = _round_up(n_tok, tok_block)
    n_blocks = n_tok_pad // tok_block

    # ids live in SMEM via scalar prefetch (n_tok up to ~200K is fine).
    # Clamp to valid rows: OOB ids would otherwise DMA garbage / fault.
    ids_flat = jnp.clip(input_ids.reshape(-1).astype(jnp.int32), 0, V - 1)
    if n_tok_pad != n_tok:
        ids_flat = jnp.pad(ids_flat, (0, n_tok_pad - n_tok))  # pad with row 0 (valid)

    table_bytes = V * D * itemsize
    out_blk_bytes = tok_block * D * itemsize
    # Fast path if the (double-buffered) table + output blocks fit comfortably
    # under the raised scoped-VMEM limit (works on v7x's 64 MiB VMEM too).
    use_fast = (not force_hbm_gather) and (2 * table_bytes + 2 * out_blk_bytes) <= (24 << 20)

    compiler_params = pltpu.CompilerParams(
        # Token blocks are fully independent -> shard across the 2 TCs on v7x;
        # neutral on v5e/v6e.
        dimension_semantics=("parallel",),
        vmem_limit_bytes=32 << 20,
    )

    if use_fast:
        grid_spec = pltpu.PrefetchScalarGridSpec(
            num_scalar_prefetch=1,
            grid=(n_blocks,),
            in_specs=[
                # Constant block index -> table DMA'd to VMEM once, stays resident.
                pl.BlockSpec((V, D), lambda i, ids: (0, 0)),
            ],
            out_specs=pl.BlockSpec((tok_block, D), lambda i, ids: (i, 0)),
        )
        kernel = functools.partial(_gather_vmem_kernel, tok_block=tok_block)
    else:
        grid_spec = pltpu.PrefetchScalarGridSpec(
            num_scalar_prefetch=1,
            grid=(n_blocks,),
            in_specs=[pl.BlockSpec(memory_space=pl.ANY)],  # table stays in HBM
            out_specs=pl.BlockSpec((tok_block, D), lambda i, ids: (i, 0)),
            scratch_shapes=[
                pltpu.VMEM((tok_block, D), dtype),
                pltpu.SemaphoreType.DMA((1,)),
            ],
        )
        kernel = functools.partial(_gather_hbm_kernel, tok_block=tok_block)

    out = pl.pallas_call(
        kernel,
        out_shape=jax.ShapeDtypeStruct((n_tok_pad, D), dtype),
        grid_spec=grid_spec,
        compiler_params=compiler_params,
    )(ids_flat, emb_weights)

    return out[:n_tok].reshape(B, S, D)


# ----------------------------- demo / check ----------------------------------

if __name__ == "__main__":
    # Small synthetic shapes consistent with the module.
    B, S = 2, 8          # batch, sequence length
    V, D = 64, 128       # vocab size, embedding dim
    pad_token_id = 0

    key = jax.random.PRNGKey(0)
    k_emb, k_ids = jax.random.split(key)

    emb_weights = jax.random.normal(k_emb, (V, D), dtype=jnp.float32)
    input_ids = jax.random.randint(k_ids, (B, S), 0, V, dtype=jnp.int32)
    input_ids = input_ids.at[0, 0].set(pad_token_id)  # ensure a pad token present

    # Reference: identical to PyTorch nn.Embedding forward semantics.
    ref = jnp.take(emb_weights, input_ids, axis=0)

    # Fast path (table resident in VMEM).
    out_fast = jax.block_until_ready(word_embedding_forward(input_ids, emb_weights))
    assert out_fast.shape == (B, S, D)
    assert jnp.allclose(out_fast, ref), "VMEM-resident gather mismatch"

    # Large-table path (batched row-gather DMAs from HBM), forced for coverage.
    out_hbm = jax.block_until_ready(
        word_embedding_forward(input_ids, emb_weights, force_hbm_gather=True)
    )
    assert out_hbm.shape == (B, S, D)
    assert jnp.allclose(out_hbm, ref), "HBM batched-DMA gather mismatch"

    print("KERNEL_OK")
</pallas_src>

<mosaic_0001>
module attributes {stable_mosaic.version = 11 : i64} {
  func.func @_gather_vmem_kernel(%arg0: i32, %arg1: memref<16xi32, #tpu.memory_space<smem>>, %arg2: memref<64x128xf32, #tpu.memory_space<vmem>>, %arg3: memref<16x128xf32, #tpu.memory_space<vmem>>) attributes {dimension_semantics = [#tpu.dimension_semantics<parallel>], iteration_bounds = array<i64: 1>, scalar_prefetch = 1 : i64, scratch_operands = 0 : i64, tpu.core_type = #tpu.core_type<tc>, window_params = [{pipeline_mode = #tpu.pipeline_mode<synchronous>, transform_indices = @transform_0, window_bounds = array<i64: 64, 128>}, {transform_indices = @transform_1, window_bounds = array<i64: 16, 128>}]} {
    %c16_i32 = arith.constant 16 : i32
    %0 = arith.muli %arg0, %c16_i32 : i32
    %c0_i32 = arith.constant 0 : i32
    %c16_i32_0 = arith.constant 16 : i32
    %1 = arith.addi %c0_i32, %c16_i32_0 : i32
    %c1_i32 = arith.constant 1 : i32
    scf.for %arg4 = %c0_i32 to %1 step %c1_i32  : i32 {
      %c1_i32_2 = arith.constant 1 : i32
      %2 = arith.muli %arg4, %c1_i32_2 : i32
      %c0_i32_3 = arith.constant 0 : i32
      %3 = arith.addi %c0_i32_3, %2 : i32
      %4 = arith.addi %0, %3 : i32
      %5 = arith.index_cast %4 : i32 to index
      %6 = memref.load %arg1[%5] : memref<16xi32, #tpu.memory_space<smem>>
      %7 = arith.index_cast %6 : i32 to index
      %c0 = arith.constant 0 : index
      %8 = vector.load %arg2[%7, %c0] : memref<64x128xf32, #tpu.memory_space<vmem>>, vector<1x128xf32>
      %9 = arith.index_cast %3 : i32 to index
      %c0_4 = arith.constant 0 : index
      %10 = vector.load %arg3[%9, %c0_4] : memref<16x128xf32, #tpu.memory_space<vmem>>, vector<1x128xf32>
      tpu.vector_store %arg3[%9, %c0_4], %8 {strides = array<i32>} : memref<16x128xf32, #tpu.memory_space<vmem>>, vector<1x128xf32>,
    }
    %c16_i32_1 = arith.constant 16 : i32
    return
  }
  func.func @transform_0(%arg0: i32, %arg1: memref<16xi32, #tpu.memory_space<smem>>) -> (i32, i32) {
    %c0_i32 = arith.constant 0 : i32
    %c0_i32_0 = arith.constant 0 : i32
    %c0_i32_1 = arith.constant 0 : i32
    return %c0_i32, %c0_i32_0 : i32, i32
  }
  func.func @transform_1(%arg0: i32, %arg1: memref<16xi32, #tpu.memory_space<smem>>) -> (i32, i32) {
    %c0_i32 = arith.constant 0 : i32
    %c0_i32_0 = arith.constant 0 : i32
    return %arg0, %c0_i32 : i32, i32
  }
}

</mosaic_0001>

<llo_original>
// kernel: tpu_custom_call.1
$region0: #{tpu_custom_call.1}
  #allocation0 [shape = 'u32[]', space=smem, size = 0x4, offset = 0x4, fixed_abs, tag = 'smem constant byte address 0x4 - core index']
  #allocation1 [shape = 'u32[144,128]{1,0:T(1,128)}', space=vmem, size = 0x12000, scoped, tag = 'internal scratch']
  #allocation2 [shape = 's32[1]{0}', space=sflag, size = 0x4, scoped, tag = 'scoped memory for tpu_custom_call.1']
  #allocation3 [shape = 'u8[512]{0}', space=smem, size = 0x200, scoped, tag = 'prefetched SMEM operand 0']
  %s0 = inlined_call_operand.hbm [shape: s32[16], index: 0, kind: input, shape index: {}]
  %s1 = inlined_call_operand.hbm [shape: f32[64,128], index: 1, kind: input, shape index: {}]
  %s2 = inlined_call_operand.hbm [shape: f32[16,128], index: 2, kind: output, shape index: {}]
  %s3 = sld [smem:[#allocation0]]
  $region25: #{tpu_custom_call.1} parent=0
    _
  %s5 = ssub.s32 1, %s3
  %s6 = scalar_select 0, %s5, %s3
  %8 = dma.hbm_to_smem %s0, 16, [#allocation3], [#allocation2]
  %9 = dma.done [#allocation2], 16
  %10 = sfence
  $region1: #{tpu_custom_call.1} parent=0
    #allocation4 [shape = 'u8[32768]{0}', space=vmem, size = 0x8000, scoped, tag = 'input window, operand 1, single buffered']
    #allocation5 [shape = 's32[1]{0}', space=sflag, size = 0x4, scoped, tag = 'scoped memory for tpu_custom_call.1']
    #allocation6 [shape = 's32[1]{0}', space=sflag, size = 0x4, scoped, tag = 'scoped memory for tpu_custom_call.1']
    #allocation7 [shape = 'u8[8192]{0}', space=vmem, size = 0x2000, scoped, tag = 'output window, operand 0, single buffered']
    %11 = vsyncpa [#allocation5], 0
    %12 = vsyncpa [#allocation6], 0
    // Predicated region
    $region2: #{tpu_custom_call.1} parent=1 // pred_check
      _
    $region3: #{tpu_custom_call.1} parent=1 // pred_check_branch
      %14 = sbr.rel (0) target = $region5
    $region4: #{tpu_custom_call.1} parent=1 // pred_region
      %s16 = ssub.s32 1024, 1024
      %17 = vsyncadd [#allocation5], %s16
      %s18 = sshll.u32 [#allocation4], 4
      %s19 = int_to_ptr.vmem [resolvable:$true] %s18
      %24 = dma.hbm_to_vmem [thread:$0]  %s1, 1024, %s19, [#allocation5], 128, 128, 8
    $region5: #{tpu_custom_call.1} parent=1 // pred_fallthru
      _
    // Predicated region
    $region6: #{tpu_custom_call.1} parent=1 // pred_check
      _
    $region7: #{tpu_custom_call.1} parent=1 // pred_check_branch
      %26 = sbr.rel (0) target = $region9
    $region8: #{tpu_custom_call.1} parent=1 // pred_region
      %27 = dma.done [#allocation5], 1024
    $region9: #{tpu_custom_call.1} parent=1 // pred_fallthru
      _
    %s28 = smul.u32 0, 16
    loop: start=0, step=1, limit=16
    $region10: #{tpu_custom_call.1} parent=1 // loop_pre_header
      _
    $region11: #{tpu_custom_call.1} parent=1 // loop_header
      %s30 = sphi 0, %s34
      %p31 = scmp.ge.s32.totalorder %s30, 16
    $region12: #{tpu_custom_call.1} parent=1 // loop_header_branch
      %33 = sbr.rel (%p31) target = $region16
    $region13: #{tpu_custom_call.1} parent=1 // loop_body
      %s35 = sadd.s32 %s28, %s30
      %s36 = sld [smem:[#allocation3 + %s35]]
      %s37 = scalar_lea.vmem [#allocation4], %s36
      %v38 = vld [vmem:[%s37] sm:$0x1]
      %s39 = scalar_lea.vmem [#allocation7], %s30
      %40 = vst [vmem:[%s39] sm:$0x1] %v38
    $region14: #{tpu_custom_call.1} parent=1 // loop_footer
      %s34 = sadd.s32 1, %s30
    $region15: #{tpu_custom_call.1} parent=1 // loop_footer_branch
      %29 = sbr.rel target = $region11
    $region16: #{tpu_custom_call.1} parent=1 // loop_exit
      _
    // Predicated region
    $region17: #{tpu_custom_call.1} parent=1 // pred_check
      _
    $region18: #{tpu_custom_call.1} parent=1 // pred_check_branch
      %42 = sbr.rel (0) target = $region20
    $region19: #{tpu_custom_call.1} parent=1 // pred_region
      %s44 = ssub.s32 256, 256
      %45 = vsyncadd [#allocation6], %s44
      %s46 = sshll.u32 [#allocation7], 4
      %s47 = int_to_ptr.vmem [resolvable:$true] %s46
      %52 = dma.vmem_to_hbm [thread:$0]  %s47, 256, %s2, [#allocation6], 128, 128, 8
    $region20: #{tpu_custom_call.1} parent=1 // pred_fallthru
      _
    // Predicated region
    $region21: #{tpu_custom_call.1} parent=1 // pred_check
      _
    $region22: #{tpu_custom_call.1} parent=1 // pred_check_branch
      %54 = sbr.rel (0) target = $region24
    $region23: #{tpu_custom_call.1} parent=1 // pred_region
      %55 = dma.done [#allocation6], 256
    $region24: #{tpu_custom_call.1} parent=1 // pred_fallthru
      _
    %56 = vsyncpa [#allocation5], 1
    %57 = vsyncpa [#allocation6], 1

</llo_original>
